<compile_context>
chip_gen: v7x
topology: tpu7x:2x2x1
jax: 0.10.0
libtpu: 0.0.40
codegen_flags: <defaults>
</compile_context>

<pallas_src>
import jax
import jax.numpy as jnp
from jax.experimental import pallas as pl
from jax.experimental.pallas import tpu as pltpu


def _normalize_kernel(mean_ref, inv_std_ref, x_ref, y_ref):
    i = pl.program_id(0)              # flattened (n, c) index -> channel scalars
    m = mean_ref[i]
    s = inv_std_ref[i]
    x = x_ref[...].astype(jnp.float32)
    y_ref[...] = ((x - m) * s).astype(y_ref.dtype)


def _pick_tile_rows(rows, max_rows=2048):
    """Largest clean divisor of `rows` that is <= max_rows (multiple of 8 when
    tiling below the full extent); falls back to the full extent."""
    if rows <= max_rows:
        return rows
    t = max_rows
    while t >= 8:
        if rows % t == 0:
            return t
        t //= 2
    return rows


def normalize(img, mean, std):
    """(img - mean) / std with per-channel mean/std, computed in a Pallas kernel."""
    squeeze_batch = img.ndim == 3
    if squeeze_batch:
        img = img[None]
    n, c, h, w = img.shape
    hw = h * w
    # Demo constraint: flatten each channel plane into whole 128-lane rows.
    # TODO(synk): ragged H*W (not a multiple of 128) would need a padded/masked tail tile.
    assert hw % 128 == 0, "kernel expects H*W to be a multiple of 128"
    rows = hw // 128
    tile_rows = _pick_tile_rows(rows)
    num_row_tiles = rows // tile_rows

    mean = jnp.asarray(mean, jnp.float32).reshape(c)
    inv_std = 1.0 / jnp.asarray(std, jnp.float32).reshape(c)
    # One SMEM scalar per (n, c) grid row -> no modulo arithmetic in-kernel.
    mean_rep = jnp.tile(mean, (n,))
    inv_std_rep = jnp.tile(inv_std, (n,))

    x3 = img.reshape(n * c, rows, 128)
    total = n * c * hw
    cost = pl.CostEstimate(
        flops=2 * total,
        transcendentals=0,
        bytes_accessed=2 * total * x3.dtype.itemsize,
    )

    y3 = pl.pallas_call(
        _normalize_kernel,
        out_shape=jax.ShapeDtypeStruct(x3.shape, img.dtype),
        grid_spec=pltpu.PrefetchScalarGridSpec(
            num_scalar_prefetch=2,
            grid=(n * c, num_row_tiles),
            in_specs=[
                pl.BlockSpec((1, tile_rows, 128), lambda i, j, m, s: (i, j, 0)),
            ],
            out_specs=pl.BlockSpec((1, tile_rows, 128), lambda i, j, m, s: (i, j, 0)),
        ),
        compiler_params=pltpu.CompilerParams(
            dimension_semantics=("parallel", "parallel")),
        cost_estimate=cost,
    )(mean_rep, inv_std_rep, x3)

    out = y3.reshape(n, c, h, w)
    if squeeze_batch:
        out = out[0]
    return out


if __name__ == "__main__":
    key = jax.random.PRNGKey(0)

    # Image batch consistent with the tutorial: NCHW, 3 channels in [0, 1].
    N, C, H, W = 2, 3, 16, 16
    img = jax.random.uniform(key, (N, C, H, W), dtype=jnp.float32)

    # ImageNet normalization constants used in the neural-style tutorial.
    mean = [0.485, 0.456, 0.406]
    std = [0.229, 0.224, 0.225]

    y = normalize(img, mean, std)
    y = jax.block_until_ready(y)

    # Reference check (plain JAX).
    m = jnp.asarray(mean, jnp.float32).reshape(1, C, 1, 1)
    s = jnp.asarray(std, jnp.float32).reshape(1, C, 1, 1)
    ref = (img - m) / s
    assert jnp.allclose(y, ref, rtol=1e-5, atol=1e-5), (y, ref)

    print("KERNEL_OK")
</pallas_src>

<mosaic_0001>
module attributes {stable_mosaic.version = 11 : i64} {
  func.func @_normalize_kernel(%arg0: i32, %arg1: i32, %arg2: memref<6xf32, #tpu.memory_space<smem>>, %arg3: memref<6xf32, #tpu.memory_space<smem>>, %arg4: memref<1x2x128xf32, #tpu.memory_space<vmem>>, %arg5: memref<1x2x128xf32, #tpu.memory_space<vmem>>) attributes {dimension_semantics = [#tpu.dimension_semantics<parallel>, #tpu.dimension_semantics<parallel>], iteration_bounds = array<i64: 6, 1>, scalar_prefetch = 2 : i64, scratch_operands = 0 : i64, tpu.core_type = #tpu.core_type<tc>, window_params = [{transform_indices = @transform_0, window_bounds = array<i64: 1, 2, 128>}, {transform_indices = @transform_1, window_bounds = array<i64: 1, 2, 128>}]} {
    %0 = arith.index_cast %arg0 : i32 to index
    %1 = memref.load %arg2[%0] : memref<6xf32, #tpu.memory_space<smem>>
    %2 = arith.index_cast %arg0 : i32 to index
    %3 = memref.load %arg3[%2] : memref<6xf32, #tpu.memory_space<smem>>
    %c0 = arith.constant 0 : index
    %c0_0 = arith.constant 0 : index
    %c0_1 = arith.constant 0 : index
    %4 = vector.load %arg4[%c0, %c0_0, %c0_1] : memref<1x2x128xf32, #tpu.memory_space<vmem>>, vector<1x2x128xf32>
    %5 = vector.broadcast %1 : f32 to vector<1x2x128xf32>
    %6 = arith.subf %4, %5 : vector<1x2x128xf32>
    %7 = vector.broadcast %3 : f32 to vector<1x2x128xf32>
    %8 = arith.mulf %6, %7 : vector<1x2x128xf32>
    %c0_2 = arith.constant 0 : index
    %c0_3 = arith.constant 0 : index
    %c0_4 = arith.constant 0 : index
    %9 = vector.load %arg5[%c0_2, %c0_3, %c0_4] : memref<1x2x128xf32, #tpu.memory_space<vmem>>, vector<1x2x128xf32>
    tpu.vector_store %arg5[%c0_2, %c0_3, %c0_4], %8 {strides = array<i32>} : memref<1x2x128xf32, #tpu.memory_space<vmem>>, vector<1x2x128xf32>,
    return
  }
  func.func @transform_0(%arg0: i32, %arg1: i32, %arg2: memref<6xf32, #tpu.memory_space<smem>>, %arg3: memref<6xf32, #tpu.memory_space<smem>>) -> (i32, i32, i32) {
    %c0_i32 = arith.constant 0 : i32
    %c0_i32_0 = arith.constant 0 : i32
    return %arg0, %arg1, %c0_i32 : i32, i32, i32
  }
  func.func @transform_1(%arg0: i32, %arg1: i32, %arg2: memref<6xf32, #tpu.memory_space<smem>>, %arg3: memref<6xf32, #tpu.memory_space<smem>>) -> (i32, i32, i32) {
    %c0_i32 = arith.constant 0 : i32
    %c0_i32_0 = arith.constant 0 : i32
    return %arg0, %arg1, %c0_i32 : i32, i32, i32
  }
}

</mosaic_0001>

<llo_original>
// kernel: tpu_custom_call.1
$region0: #{tpu_custom_call.1}
  #allocation0 [shape = 'u32[]', space=smem, size = 0x4, offset = 0x4, fixed_abs, tag = 'smem constant byte address 0x4 - core index']
  #allocation1 [shape = 'u32[144,128]{1,0:T(1,128)}', space=vmem, size = 0x12000, scoped, tag = 'internal scratch']
  #allocation2 [shape = 's32[1]{0}', space=sflag, size = 0x4, scoped, tag = 'scoped memory for tpu_custom_call.1']
  #allocation3 [shape = 'u8[512]{0}', space=smem, size = 0x200, scoped, tag = 'prefetched SMEM operand 0']
  #allocation4 [shape = 'u8[512]{0}', space=smem, size = 0x200, scoped, tag = 'prefetched SMEM operand 1']
  %s0 = inlined_call_operand.hbm [shape: f32[6], index: 0, kind: input, shape index: {}]
  %s1 = inlined_call_operand.vmem [shape: f32[6], index: 1, kind: input, shape index: {}]
  %s2 = inlined_call_operand.hbm [shape: f32[6,2,128], index: 2, kind: input, shape index: {}]
  %s3 = inlined_call_operand.hbm [shape: f32[6,2,128], index: 3, kind: output, shape index: {}]
  %s4 = sld [smem:[#allocation0]]
  $region41: #{tpu_custom_call.1} parent=0
    _
  %s6 = ssub.s32 1, %s4
  %s7 = scalar_select 0, %s6, %s4
  %9 = dma.hbm_to_smem %s0, 16, [#allocation3], [#allocation2]
  %s10 = sshll.u32 %s1, 4
  %s11 = int_to_ptr.vmem [resolvable:$true] %s10
  %13 = dma.vmem_to_smem %s11, 16, [#allocation4], [#allocation2]
  %14 = dma.done [#allocation2], 32
  %15 = sfence
  $region1: #{tpu_custom_call.1} parent=0
    #allocation5 [shape = 'u8[2048]{0}', space=vmem, size = 0x800, scoped, tag = 'input window, operand 2']
    #allocation6 [shape = 's32[2]{0}', space=sflag, size = 0x8, scoped, tag = 'scoped memory for tpu_custom_call.1']
    #allocation7 [shape = 's32[2]{0}', space=sflag, size = 0x8, scoped, tag = 'scoped memory for tpu_custom_call.1']
    #allocation8 [shape = 'u8[2048]{0}', space=vmem, size = 0x800, scoped, tag = 'output window, operand 0']
    %16 = vsyncpa [#allocation6], 0
    %s17 = scalar_lea.sflag [#allocation6], 1
    %18 = vsyncpa %s17, 0
    %19 = vsyncpa [#allocation7], 0
    %s20 = scalar_lea.sflag [#allocation7], 1
    %21 = vsyncpa %s20, 0
    loop: start=0, step=1, limit=8
    $region2: #{tpu_custom_call.1} parent=1 // loop_pre_header
      _
    $region3: #{tpu_custom_call.1} parent=1 // loop_header
      %s23 = sphi 0, %s27
      %p24 = scmp.ge.s32.totalorder %s23, 8
      %s30 = sphi 0, %s42
      %s31 = sphi 0, %s38
      %s32 = sphi 0, %s30
      %s33 = sphi 0, %s31
      %s34 = sphi 0, %s32
      %s35 = sphi 0, %s33
      %s47 = sphi 0, %s49
      %s50 = sphi 0, %s47
      %s51 = sphi 0, %s50
      %s67 = sphi 0, %s51
      %s75 = sphi 0, %s77
      %s78 = sphi 0, %s75
      %s79 = sphi 0, %s78
      %s95 = sphi 0, %s79
    $region4: #{tpu_custom_call.1} parent=1 // loop_header_branch
      %26 = sbr.rel (%p24) target = $region8
    $region5: #{tpu_custom_call.1} parent=1 // loop_body
      %s28 = ssub.s32 %s23, 1
      %s29 = ssub.s32 %s23, 2
      %s36 = sadd.s32 1, %s31
      %p37 = scmp.ge.s32.totalorder %s36, 1
      %s38 = scalar_select %p37, 0, %s36
      %s39 = sadd.s32 1, %s30
      %s40 = scalar_select %p37, %s39, %s30
      %p41 = scmp.ge.s32.totalorder %s40, 6
      %s42 = scalar_select %p41, 0, %s40
      %s43 = ssub.s32 %s30, %s42
      %s44 = ssub.s32 %s31, %s38
      %s45 = sor.u32 %s43, %s44
      %p46 = scmp.eq.s32.totalorder %s45, 0
      %s48 = sadd.s32 %s47, 1
      %s49 = scalar_select %p46, %s47, %s48
      %p52 = pneg %p46
      %p53 = scmp.eq.s32.totalorder %s23, 5
      %p54 = por %p52, %p53
      %p55 = scmp.ne.s32.totalorder %s47, %s50
      %p56 = scmp.eq.s32.totalorder %s23, 0
      %p57 = por %p55, %p56
      %p58 = scmp.ne.s32.totalorder %s47, %s50
      %p59 = scmp.eq.s32.totalorder %s28, 5
      %p60 = por %p58, %p59
      %p61 = scmp.ne.s32.totalorder %s50, %s51
      %p62 = scmp.eq.s32.totalorder %s28, 0
      %p63 = por %p61, %p62
      %p64 = scmp.ne.s32.totalorder %s50, %s51
      %p65 = scmp.eq.s32.totalorder %s29, 5
      %p66 = por %p64, %p65
      %p68 = scmp.ne.s32.totalorder %s51, %s67
      %p69 = scmp.eq.s32.totalorder %s29, 0
      %p70 = por %p68, %p69
      %s71 = ssub.s32 %s30, %s42
      %s72 = ssub.s32 %s31, %s38
      %s73 = sor.u32 %s71, %s72
      %p74 = scmp.eq.s32.totalorder %s73, 0
      %s76 = sadd.s32 %s75, 1
      %s77 = scalar_select %p74, %s75, %s76
      %p80 = pneg %p74
      %p81 = scmp.eq.s32.totalorder %s23, 5
      %p82 = por %p80, %p81
      %p83 = scmp.ne.s32.totalorder %s75, %s78
      %p84 = scmp.eq.s32.totalorder %s23, 0
      %p85 = por %p83, %p84
      %p86 = scmp.ne.s32.totalorder %s75, %s78
      %p87 = scmp.eq.s32.totalorder %s28, 5
      %p88 = por %p86, %p87
      %p89 = scmp.ne.s32.totalorder %s78, %s79
      %p90 = scmp.eq.s32.totalorder %s28, 0
      %p91 = por %p89, %p90
      %p92 = scmp.ne.s32.totalorder %s78, %s79
      %p93 = scmp.eq.s32.totalorder %s29, 5
      %p94 = por %p92, %p93
      %p96 = scmp.ne.s32.totalorder %s79, %s95
      %p97 = scmp.eq.s32.totalorder %s29, 0
      %p98 = por %p96, %p97
      %p99 = scmp.le.s32.totalorder 1, %s23
      %p100 = scmp.lt.s32.totalorder %s23, 7
      %p101 = pnand %p99, %p100
      %p102 = pneg %p101
      // Predicated region
      $region9: #{tpu_custom_call.1} parent=5 // pred_check
        _
      $region10: #{tpu_custom_call.1} parent=5 // pred_check_branch
        %104 = sbr.rel (%p101) target = $region12
      $region11: #{tpu_custom_call.1} parent=5 // pred_region
        %s105 = ssub.s32 %s23, 1
      $region12: #{tpu_custom_call.1} parent=5 // pred_fallthru
        _
      %p106 = scmp.lt.s32.totalorder %s23, 6
      // Predicated region
      $region13: #{tpu_custom_call.1} parent=5 // pred_check
        %p107 = pneg %p106
      $region14: #{tpu_custom_call.1} parent=5 // pred_check_branch
        %109 = sbr.rel (%p107) target = $region16
      $region15: #{tpu_custom_call.1} parent=5 // pred_region
        // Predicated region
        $region17: #{tpu_custom_call.1} parent=15 // pred_check
          %p110 = pneg %p57
        $region18: #{tpu_custom_call.1} parent=15 // pred_check_branch
          %112 = sbr.rel (%p110) target = $region20
        $region19: #{tpu_custom_call.1} parent=15 // pred_region
          %s113 = sand.u32 %s47, 1
          %s114 = scalar_lea.sflag [#allocation6], %s113
          %s115 = sand.u32 %s47, 1
          %s116 = smul.addr %s115, 2
          %s117 = scalar_lea.vmem [#allocation5], %s116
          %s119 = ssub.s32 32, 32
          %120 = vsyncadd %s114, %s119
          %s121 = sadd.s32 %s31, %s30
          %s122 = smul.addr %s121, 32
          %s123 = scalar_lea.hbm %s2, %s122
          %s125 = sshll.u32 %s117, 4
          %s126 = int_to_ptr.vmem [resolvable:$true] %s125
          %128 = dma.hbm_to_vmem [thread:$0]  %s123, 32, %s126, %s114
        $region20: #{tpu_custom_call.1} parent=15 // pred_fallthru
          _
      $region16: #{tpu_custom_call.1} parent=5 // pred_fallthru
        _
      %p129 = scmp.le.s32.totalorder 1, %s23
      %p130 = scmp.lt.s32.totalorder %s23, 7
      %p131 = pnand %p129, %p130
      %p132 = pneg %p131
      // Predicated region
      $region21: #{tpu_custom_call.1} parent=5 // pred_check
        _
      $region22: #{tpu_custom_call.1} parent=5 // pred_check_branch
        %134 = sbr.rel (%p131) target = $region24
      $region23: #{tpu_custom_call.1} parent=5 // pred_region
        %s135 = ssub.s32 %s23, 1
        %s136 = sand.u32 %s50, 1
        %s137 = scalar_lea.sflag [#allocation6], %s136
        %s138 = sand.u32 %s50, 1
        %s139 = smul.addr %s138, 2
        %s140 = scalar_lea.vmem [#allocation5], %s139
        // Predicated region
        $region25: #{tpu_custom_call.1} parent=23 // pred_check
          %p141 = pneg %p63
        $region26: #{tpu_custom_call.1} parent=23 // pred_check_branch
          %143 = sbr.rel (%p141) target = $region28
        $region27: #{tpu_custom_call.1} parent=23 // pred_region
          %144 = dma.done %s137, 32
        $region28: #{tpu_custom_call.1} parent=23 // pred_fallthru
          _
        %s145 = sand.u32 %s50, 1
        %s146 = scalar_lea.sflag [#allocation6], %s145
        %s147 = sand.u32 %s50, 1
        %s148 = smul.addr %s147, 2
        %s149 = scalar_lea.vmem [#allocation5], %s148
        %p150 = pneg %p63
        %p151 = pneg %p60
        %p152 = pneg %p91
        %p153 = pneg %p88
        %s154 = sand.u32 %s78, 1
        %s155 = scalar_lea.sflag [#allocation7], %s154
        %s156 = sand.u32 %s78, 1
        %s157 = smul.addr %s156, 2
        %s158 = scalar_lea.vmem [#allocation8], %s157
        %s159 = sld [smem:[#allocation3 + %s32]]
        %s160 = sld [smem:[#allocation4 + %s32]]
        %v161 = vld [vmem:[%s140] sm:$0x3]
        %v162 = vstv %s159
        %v163 = vsub.f32 %v161, %v162
        %v164 = vstv %s160
        %v165 = vmul.f32 %v163, %v164
        %166 = vst [vmem:[%s158] sm:$0x3] %v165
        %s167 = sand.u32 %s78, 1
        %s168 = scalar_lea.sflag [#allocation7], %s167
        %s169 = sand.u32 %s78, 1
        %s170 = smul.addr %s169, 2
        %s171 = scalar_lea.vmem [#allocation8], %s170
        // Predicated region
        $region29: #{tpu_custom_call.1} parent=23 // pred_check
          %p172 = pneg %p88
        $region30: #{tpu_custom_call.1} parent=23 // pred_check_branch
          %174 = sbr.rel (%p172) target = $region32
        $region31: #{tpu_custom_call.1} parent=23 // pred_region
          %s176 = ssub.s32 32, 32
          %177 = vsyncadd %s168, %s176
          %s178 = sadd.s32 %s33, %s32
          %s179 = smul.addr %s178, 32
          %s180 = scalar_lea.hbm %s3, %s179
          %s182 = sshll.u32 %s171, 4
          %s183 = int_to_ptr.vmem [resolvable:$true] %s182
          %185 = dma.vmem_to_hbm [thread:$0]  %s183, 32, %s180, %s168
        $region32: #{tpu_custom_call.1} parent=23 // pred_fallthru
          _
      $region24: #{tpu_custom_call.1} parent=5 // pred_fallthru
        _
      %p186 = scmp.le.s32.totalorder 2, %s23
      // Predicated region
      $region33: #{tpu_custom_call.1} parent=5 // pred_check
        %p187 = pneg %p186
      $region34: #{tpu_custom_call.1} parent=5 // pred_check_branch
        %189 = sbr.rel (%p187) target = $region36
      $region35: #{tpu_custom_call.1} parent=5 // pred_region
        %s190 = ssub.s32 %s23, 2
        // Predicated region
        $region37: #{tpu_custom_call.1} parent=35 // pred_check
          %p191 = pneg %p94
        $region38: #{tpu_custom_call.1} parent=35 // pred_check_branch
          %193 = sbr.rel (%p191) target = $region40
        $region39: #{tpu_custom_call.1} parent=35 // pred_region
          %s194 = sand.u32 %s79, 1
          %s195 = scalar_lea.sflag [#allocation7], %s194
          %s196 = sand.u32 %s79, 1
          %s197 = smul.addr %s196, 2
          %s198 = scalar_lea.vmem [#allocation8], %s197
          %199 = dma.done %s195, 32
        $region40: #{tpu_custom_call.1} parent=35 // pred_fallthru
          _
      $region36: #{tpu_custom_call.1} parent=5 // pred_fallthru
        _
    $region6: #{tpu_custom_call.1} parent=1 // loop_footer
      %s27 = sadd.s32 1, %s23
    $region7: #{tpu_custom_call.1} parent=1 // loop_footer_branch
      %22 = sbr.rel target = $region3
    $region8: #{tpu_custom_call.1} parent=1 // loop_exit
      _
    %200 = vsyncpa [#allocation6], 1
    %s201 = scalar_lea.sflag [#allocation6], 1
    %202 = vsyncpa %s201, 1
    %203 = vsyncpa [#allocation7], 1
    %s204 = scalar_lea.sflag [#allocation7], 1
    %205 = vsyncpa %s204, 1

</llo_original>
